<compile_context>
chip_gen: v7x
topology: tpu7x:2x2x1
jax: 0.10.0
libtpu: 0.0.40
codegen_flags: <defaults>
</compile_context>

<pallas_src>
import functools
import math

import jax
import jax.numpy as jnp
import numpy as np
from jax.experimental import pallas as pl
from jax.experimental.pallas import tpu as pltpu

NUM_LANES = 128
VMEM_LIMIT = 32 * 1024 * 1024  # well above the few-MiB footprint; headroom on v7x


def _pick_tile(dim, tile):
    """Largest divisor of `dim` that is <= tile (power-of-two steps down to 128)."""
    if dim <= tile:
        return dim
    t = tile
    while t >= 128:
        if dim % t == 0:
            return t
        t //= 2
    # TODO(synk): non-divisible dims fall back to one full-size block (fine for
    # toy shapes); pad real sequence lengths instead of hitting this path.
    return dim


# ---------------------------------------------------------------------------
# Tiled projection matmul (bf16 operands, f32 accumulator scratch)
# ---------------------------------------------------------------------------
def _matmul_kernel(x_ref, w_ref, o_ref, acc_ref):
    @pl.when(pl.program_id(2) == 0)
    def _():
        acc_ref[...] = jnp.zeros_like(acc_ref)

    acc_ref[...] += jnp.dot(x_ref[...], w_ref[...],
                            preferred_element_type=jnp.float32)

    @pl.when(pl.program_id(2) == pl.num_programs(2) - 1)
    def _():
        o_ref[...] = acc_ref[...].astype(o_ref.dtype)


def pallas_matmul(x, w, out_dtype=jnp.bfloat16, bm=512, bn=512, bk=512):
    """x: (M, K) @ w: (K, N) -> (M, N). Weights stored (in, out): no W.T."""
    M, K = x.shape
    K2, N = w.shape
    assert K == K2
    tm, tn, tk = _pick_tile(M, bm), _pick_tile(N, bn), _pick_tile(K, bk)
    grid = (M // tm, N // tn, K // tk)
    return pl.pallas_call(
        _matmul_kernel,
        out_shape=jax.ShapeDtypeStruct((M, N), out_dtype),
        grid=grid,
        in_specs=[
            pl.BlockSpec((tm, tk), lambda i, j, k: (i, k)),
            pl.BlockSpec((tk, tn), lambda i, j, k: (k, j)),
        ],
        out_specs=pl.BlockSpec((tm, tn), lambda i, j, k: (i, j)),
        scratch_shapes=[pltpu.VMEM((tm, tn), jnp.float32)],
        compiler_params=pltpu.CompilerParams(
            dimension_semantics=("parallel", "parallel", "arbitrary"),
            vmem_limit_bytes=VMEM_LIMIT),
    )(x, w)


# ---------------------------------------------------------------------------
# Flash-style attention, GQA-folded, with eviction-mask renormalization
# ---------------------------------------------------------------------------
def _flash_kernel(q_ref, k_ref, v_ref, em_ref, o_ref,
                  m_scr, z_scr, l_scr, acc_scr, *, scale, tq, tk):
    qi = pl.program_id(2)
    ki = pl.program_id(3)

    @pl.when(ki == 0)
    def _init():
        m_scr[...] = jnp.full(m_scr.shape, -1e30, jnp.float32)
        z_scr[...] = jnp.zeros(z_scr.shape, jnp.float32)
        l_scr[...] = jnp.zeros(l_scr.shape, jnp.float32)
        acc_scr[...] = jnp.zeros(acc_scr.shape, jnp.float32)

    # Last KV tile that intersects the causal region of this Q tile.
    last_valid_ki = (qi * tq + (tq - 1)) // tk

    @pl.when(ki <= last_valid_ki)
    def _compute():
        q = q_ref[0, 0]                      # (R, TQ, D)  bf16
        k = k_ref[0, 0]                      # (TK, D)     bf16
        v = v_ref[0, 0]                      # (TK, D)     bf16
        em = em_ref[0, 0]                    # (R, TQ, TK) int8 {0,1}
        R, TQ, D = q.shape
        TK = k.shape[0]

        # Single (R*TQ, D) x (D, TK) MXU matmul for all folded q-heads.
        s = jax.lax.dot_general(
            q.reshape(R * TQ, D), k, (((1,), (1,)), ((), ())),
            preferred_element_type=jnp.float32).reshape(R, TQ, TK) * scale

        def update(s_eff):
            # Stats scratch is lane-replicated; compute on (.., 1) slices so the
            # exp/alpha EUP work stays narrow, store back lane-dense (unmasked vst).
            m_prev1 = m_scr[...][:, :, 0:1]
            z_prev1 = z_scr[...][:, :, 0:1]
            l_prev1 = l_scr[...][:, :, 0:1]
            m_cur1 = jnp.max(s_eff, axis=-1, keepdims=True)
            m_next1 = jnp.maximum(m_prev1, m_cur1)
            alpha1 = jnp.exp(m_prev1 - m_next1)
            # TODO(synk): bf16 exp (v6e/v7x EUP) would ~halve the transcendental
            # path; kept f32 here for accuracy margin.
            p = jnp.exp(s_eff - m_next1)               # masked entries underflow to 0
            pe = jnp.where(em != 0, p, 0.0)            # eviction mask, no cast/mul pass
            z1 = alpha1 * z_prev1 + jnp.sum(p, axis=-1, keepdims=True)
            l1 = alpha1 * l_prev1 + jnp.sum(pe, axis=-1, keepdims=True)
            pv = jax.lax.dot_general(
                pe.reshape(R * TQ, TK).astype(jnp.bfloat16), v,
                (((1,), (0,)), ((), ())),
                preferred_element_type=jnp.float32).reshape(R, TQ, D)
            acc_scr[...] = alpha1 * acc_scr[...] + pv
            m_scr[...] = jnp.broadcast_to(m_next1, m_scr.shape)
            z_scr[...] = jnp.broadcast_to(z1, z_scr.shape)
            l_scr[...] = jnp.broadcast_to(l1, l_scr.shape)

        # Interior tiles (fully below the diagonal) skip mask generation.
        interior = (ki * tk + (tk - 1)) <= (qi * tq)

        @pl.when(interior)
        def _interior():
            update(s)

        @pl.when(jnp.logical_not(interior))
        def _diagonal():
            q_pos = qi * tq + jax.lax.broadcasted_iota(jnp.int32, s.shape, 1)
            k_pos = ki * tk + jax.lax.broadcasted_iota(jnp.int32, s.shape, 2)
            update(jnp.where(k_pos <= q_pos, s, -1e30))

    @pl.when(ki == pl.num_programs(3) - 1)
    def _finalize():
        z1 = z_scr[...][:, :, 0:1]
        l1 = l_scr[...][:, :, 0:1]
        # out = acc / (l + 1e-6 * z)  ==  (softmax*em) / (sum(softmax*em)+1e-6)
        denom = l1 + 1e-6 * z1
        o_ref[0, 0] = (acc_scr[...] / denom).astype(o_ref.dtype)


def flash_attention(q, k, v, em_i8, *, block_q=256, block_k=512):
    """q: (B, Hkv, n_rep, S, D) bf16; k, v: (B, Hkv, S, D) bf16;
    em_i8: (B, Hkv, n_rep, S, S) int8 {0,1}.  Returns (B, Hkv, n_rep, S, D) bf16."""
    B, Hkv, R, S, D = q.shape
    tq = _pick_tile(S, block_q)
    tk = _pick_tile(S, block_k)
    scale = 1.0 / math.sqrt(D)
    grid = (B, Hkv, S // tq, S // tk)

    def clamp(qi, ki):
        # Clamp above-diagonal KV tiles to the previous block index so their
        # DMAs are skipped (compute is skipped in-kernel by pl.when).
        return jnp.minimum(ki, (qi * tq + (tq - 1)) // tk)

    kernel = functools.partial(_flash_kernel, scale=scale, tq=tq, tk=tk)
    return pl.pallas_call(
        kernel,
        out_shape=jax.ShapeDtypeStruct((B, Hkv, R, S, D), jnp.bfloat16),
        grid=grid,
        in_specs=[
            pl.BlockSpec((1, 1, R, tq, D), lambda b, h, qi, ki: (b, h, 0, qi, 0)),
            pl.BlockSpec((1, 1, tk, D),
                         lambda b, h, qi, ki: (b, h, clamp(qi, ki), 0)),
            pl.BlockSpec((1, 1, tk, D),
                         lambda b, h, qi, ki: (b, h, clamp(qi, ki), 0)),
            pl.BlockSpec((1, 1, R, tq, tk),
                         lambda b, h, qi, ki: (b, h, 0, qi, clamp(qi, ki))),
        ],
        out_specs=pl.BlockSpec((1, 1, R, tq, D),
                               lambda b, h, qi, ki: (b, h, 0, qi, 0)),
        scratch_shapes=[
            pltpu.VMEM((R, tq, NUM_LANES), jnp.float32),   # m (running max)
            pltpu.VMEM((R, tq, NUM_LANES), jnp.float32),   # z (softmax partition)
            pltpu.VMEM((R, tq, NUM_LANES), jnp.float32),   # l (evicted sum)
            pltpu.VMEM((R, tq, D), jnp.float32),           # acc
        ],
        compiler_params=pltpu.CompilerParams(
            dimension_semantics=("parallel", "parallel", "parallel", "arbitrary"),
            vmem_limit_bytes=VMEM_LIMIT),
    )(q, k, v, em_i8)


# ---------------------------------------------------------------------------
# JAX glue (RoPE / LoRA / parameter fusion)
# ---------------------------------------------------------------------------
def precompute_freqs(head_dim, seqlen, start_pos, theta=10000.0):
    inv = 1.0 / (theta ** (jnp.arange(0, head_dim, 2, dtype=jnp.float32) / head_dim))
    t = jnp.arange(start_pos, start_pos + seqlen, dtype=jnp.float32)
    f = jnp.outer(t, inv)                       # (S, head_dim // 2)
    return jnp.cos(f), jnp.sin(f)


def apply_rope(x, cos, sin):
    """x: (B, S, H, D) bf16; RoPE math in f32, cast back (matches type_as)."""
    # TODO(synk): fuse RoPE + the (0,2,1,3) layout change into the flash
    # kernel's Q/K tile load (pltpu.roll + select) to avoid this HBM round trip.
    xf = x.astype(jnp.float32).reshape(*x.shape[:-1], -1, 2)
    xr, xi = xf[..., 0], xf[..., 1]
    c = cos[None, :, None, :]
    s = sin[None, :, None, :]
    out = jnp.stack([xr * c - xi * s, xr * s + xi * c], axis=-1)
    return out.reshape(x.shape).astype(x.dtype)


def prepare_params(raw):
    """Hoisted weight fusion (done once at load time, not per forward call)."""
    q_out = raw["wq"].shape[1]
    kv_out = raw["wk"].shape[1]
    r = raw["lora_q_A"].shape[1]
    wqkv = jnp.concatenate([raw["wq"], raw["wk"], raw["wv"]], axis=1)
    lora_A = jnp.concatenate(
        [raw["lora_q_A"], raw["lora_k_A"], raw["lora_v_A"]], axis=1)   # (dim, 3r)
    lora_B = jnp.zeros((3 * r, q_out + 2 * kv_out), jnp.float32)       # block-diag
    lora_B = lora_B.at[0 * r:1 * r, :q_out].set(raw["lora_q_B"])
    lora_B = lora_B.at[1 * r:2 * r, q_out:q_out + kv_out].set(raw["lora_k_B"])
    lora_B = lora_B.at[2 * r:3 * r, q_out + kv_out:].set(raw["lora_v_B"])
    return {"wqkv": wqkv, "wo": raw["wo"], "lora_A": lora_A, "lora_B": lora_B}


def attention_forward(params, x, start_pos, eviction_mask_i8,
                      n_heads, n_kv_heads, use_pallas=True):
    bsz, seqlen, dim = x.shape
    head_dim = dim // n_heads
    n_rep = n_heads // n_kv_heads
    q_out = n_heads * head_dim
    kv_out = n_kv_heads * head_dim

    x2 = x.reshape(bsz * seqlen, dim)            # bf16

    if use_pallas:
        qkv = pallas_matmul(x2, params["wqkv"], out_dtype=jnp.bfloat16)
    else:
        qkv = jnp.dot(x2, params["wqkv"],
                      preferred_element_type=jnp.float32).astype(jnp.bfloat16)

    # Fused LoRA: one rank-3r A pass + one block-diagonal B matmul (rank<=24
    # uses a tiny fraction of the MXU -> left to XLA per perf review).
    # TODO(synk): nn.Dropout(0.05) has no deterministic Pallas equivalent; eval
    #             (identity) semantics are used here.
    lora = ((x2.astype(jnp.float32) @ params["lora_A"]) @ params["lora_B"]
            ).astype(jnp.bfloat16)
    qkv = qkv + lora

    xq = qkv[:, :q_out].reshape(bsz, seqlen, n_heads, head_dim)
    xk = qkv[:, q_out:q_out + kv_out].reshape(bsz, seqlen, n_kv_heads, head_dim)
    xv = qkv[:, q_out + kv_out:].reshape(bsz, seqlen, n_kv_heads, head_dim)

    cos, sin = precompute_freqs(head_dim, seqlen, start_pos)
    xq = apply_rope(xq, cos, sin)
    xk = apply_rope(xk, cos, sin)

    q = jnp.transpose(xq, (0, 2, 1, 3))          # (B, H,   S, D)
    k = jnp.transpose(xk, (0, 2, 1, 3))          # (B, Hkv, S, D)
    v = jnp.transpose(xv, (0, 2, 1, 3))

    if use_pallas:
        q5 = q.reshape(bsz, n_kv_heads, n_rep, seqlen, head_dim)
        em5 = eviction_mask_i8.reshape(bsz, n_kv_heads, n_rep, seqlen, seqlen)
        out = flash_attention(q5, k, v, em5).reshape(
            bsz, n_heads, seqlen, head_dim)
    else:
        k_r = jnp.repeat(k, n_rep, axis=1)
        v_r = jnp.repeat(v, n_rep, axis=1)
        scale = 1.0 / math.sqrt(head_dim)
        s = jnp.einsum("bhqd,bhkd->bhqk", q, k_r,
                       preferred_element_type=jnp.float32) * scale
        idx = jnp.arange(seqlen)
        causal = idx[None, :] <= idx[:, None]
        s = jnp.where(causal[None, None], s, -1e30)
        p = jax.nn.softmax(s, axis=-1)
        p = p * eviction_mask_i8.astype(jnp.float32)
        p = p / (jnp.sum(p, axis=-1, keepdims=True) + 1e-6)
        out = jnp.einsum("bhqk,bhkd->bhqd", p.astype(jnp.bfloat16), v_r,
                         preferred_element_type=jnp.float32).astype(jnp.bfloat16)

    out2 = jnp.transpose(out, (0, 2, 1, 3)).reshape(bsz * seqlen, q_out)
    if use_pallas:
        o = pallas_matmul(out2, params["wo"], out_dtype=jnp.bfloat16)
    else:
        o = jnp.dot(out2, params["wo"],
                    preferred_element_type=jnp.float32).astype(jnp.bfloat16)
    return o.reshape(bsz, seqlen, dim)


# ---------------------------------------------------------------------------
# Main
# ---------------------------------------------------------------------------
if __name__ == "__main__":
    # Small, consistent ModelArgs-like config.
    dim, n_heads, n_kv_heads, lora_rank = 32, 4, 2, 8
    bsz, seqlen, start_pos = 2, 8, 0
    head_dim = dim // n_heads

    key = jax.random.PRNGKey(0)
    ks = jax.random.split(key, 12)

    # Weights stored pre-transposed as (in_features, out_features).
    raw_params = {
        "wq": (jax.random.normal(ks[0], (dim, n_heads * head_dim), jnp.float32) * 0.05).astype(jnp.bfloat16),
        "wk": (jax.random.normal(ks[1], (dim, n_kv_heads * head_dim), jnp.float32) * 0.05).astype(jnp.bfloat16),
        "wv": (jax.random.normal(ks[2], (dim, n_kv_heads * head_dim), jnp.float32) * 0.05).astype(jnp.bfloat16),
        "wo": (jax.random.normal(ks[3], (n_heads * head_dim, dim), jnp.float32) * 0.05).astype(jnp.bfloat16),
        # LoRA A: normal(std=1/rank) per module init; B: nonzero here (instead
        # of the module's zeros init) so the LoRA path actually contributes.
        "lora_q_A": jax.random.normal(ks[4], (dim, lora_rank), jnp.float32) / lora_rank,
        "lora_q_B": jax.random.normal(ks[5], (lora_rank, n_heads * head_dim), jnp.float32) * 0.02,
        "lora_k_A": jax.random.normal(ks[6], (dim, lora_rank), jnp.float32) / lora_rank,
        "lora_k_B": jax.random.normal(ks[7], (lora_rank, n_kv_heads * head_dim), jnp.float32) * 0.02,
        "lora_v_A": jax.random.normal(ks[8], (dim, lora_rank), jnp.float32) / lora_rank,
        "lora_v_B": jax.random.normal(ks[9], (lora_rank, n_kv_heads * head_dim), jnp.float32) * 0.02,
    }
    params = prepare_params(raw_params)   # fusion hoisted out of the forward pass

    x = jax.random.normal(ks[10], (bsz, seqlen, dim), jnp.float32).astype(jnp.bfloat16)

    # Eviction mask: multiplicative, binary {0,1}, streamed as int8.
    eviction_mask = jax.random.bernoulli(
        ks[11], 0.7, (bsz, n_heads, seqlen, seqlen)).astype(jnp.int8)

    out = attention_forward(params, x, start_pos, eviction_mask,
                            n_heads, n_kv_heads, use_pallas=True)
    out = jax.block_until_ready(out)

    ref = attention_forward(params, x, start_pos, eviction_mask,
                            n_heads, n_kv_heads, use_pallas=False)
    ref = jax.block_until_ready(ref)

    assert out.shape == (bsz, seqlen, dim)
    # bf16 MXU operands + differing quantization point of p bound agreement ~0.5%.
    np.testing.assert_allclose(np.asarray(out.astype(jnp.float32)),
                               np.asarray(ref.astype(jnp.float32)),
                               rtol=5e-3, atol=5e-3)
    print("KERNEL_OK")
</pallas_src>

<mosaic_0001>
module attributes {stable_mosaic.version = 11 : i64} {
  func.func @_matmul_kernel(%arg0: i32, %arg1: i32, %arg2: i32, %arg3: memref<16x32xbf16, #tpu.memory_space<vmem>>, %arg4: memref<32x64xbf16, #tpu.memory_space<vmem>>, %arg5: memref<16x64xbf16, #tpu.memory_space<vmem>>, %arg6: memref<16x64xf32, #tpu.memory_space<vmem>>) attributes {dimension_semantics = [#tpu.dimension_semantics<parallel>, #tpu.dimension_semantics<parallel>, #tpu.dimension_semantics<arbitrary>], iteration_bounds = array<i64: 1, 1, 1>, scalar_prefetch = 0 : i64, scratch_operands = 1 : i64, tpu.core_type = #tpu.core_type<tc>, window_params = [{transform_indices = @transform_0, window_bounds = array<i64: 16, 32>}, {transform_indices = @transform_1, window_bounds = array<i64: 32, 64>}, {transform_indices = @transform_2, window_bounds = array<i64: 16, 64>}]} {
    %c0_i32 = arith.constant 0 : i32
    %0 = arith.cmpi eq, %arg2, %c0_i32 : i32
    %1 = arith.extui %0 : i1 to i32
    %c0_i32_0 = arith.constant 0 : i32
    %2 = arith.cmpi ne, %1, %c0_i32_0 : i32
    scf.if %2 {
      %cst_10 = arith.constant 0.000000e+00 : f32
      %12 = vector.broadcast %cst_10 : f32 to vector<16x64xf32>
      %c0_11 = arith.constant 0 : index
      %c0_12 = arith.constant 0 : index
      %13 = vector.load %arg6[%c0_11, %c0_12] : memref<16x64xf32, #tpu.memory_space<vmem>>, vector<16x64xf32>
      tpu.vector_store %arg6[%c0_11, %c0_12], %12 {strides = array<i32>} : memref<16x64xf32, #tpu.memory_space<vmem>>, vector<16x64xf32>,
    } else {
    }
    %c0 = arith.constant 0 : index
    %c0_1 = arith.constant 0 : index
    %3 = vector.load %arg6[%c0, %c0_1] : memref<16x64xf32, #tpu.memory_space<vmem>>, vector<16x64xf32>
    %c0_2 = arith.constant 0 : index
    %c0_3 = arith.constant 0 : index
    %4 = vector.load %arg3[%c0_2, %c0_3] : memref<16x32xbf16, #tpu.memory_space<vmem>>, vector<16x32xbf16>
    %c0_4 = arith.constant 0 : index
    %c0_5 = arith.constant 0 : index
    %5 = vector.load %arg4[%c0_4, %c0_5] : memref<32x64xbf16, #tpu.memory_space<vmem>>, vector<32x64xbf16>
    %cst = arith.constant dense<0.000000e+00> : vector<16x64xf32>
    %6 = tpu.matmul %4, %5, %cst {dimension_numbers = #tpu.dot_dimension_numbers<[1], [0], [0], [1], [0, 0, 1, 1], [], []>} : vector<16x32xbf16>, vector<32x64xbf16>, vector<16x64xf32> -> vector<16x64xf32>
    %7 = arith.addf %3, %6 : vector<16x64xf32>
    %c0_6 = arith.constant 0 : index
    %c0_7 = arith.constant 0 : index
    %8 = vector.load %arg6[%c0_6, %c0_7] : memref<16x64xf32, #tpu.memory_space<vmem>>, vector<16x64xf32>
    tpu.vector_store %arg6[%c0_6, %c0_7], %7 {strides = array<i32>} : memref<16x64xf32, #tpu.memory_space<vmem>>, vector<16x64xf32>,
    %c0_i32_8 = arith.constant 0 : i32
    %9 = arith.cmpi eq, %arg2, %c0_i32_8 : i32
    %10 = arith.extui %9 : i1 to i32
    %c0_i32_9 = arith.constant 0 : i32
    %11 = arith.cmpi ne, %10, %c0_i32_9 : i32
    scf.if %11 {
      %c0_10 = arith.constant 0 : index
      %c0_11 = arith.constant 0 : index
      %12 = vector.load %arg6[%c0_10, %c0_11] : memref<16x64xf32, #tpu.memory_space<vmem>>, vector<16x64xf32>
      %13 = arith.truncf %12 : vector<16x64xf32> to vector<16x64xbf16>
      %c0_12 = arith.constant 0 : index
      %c0_13 = arith.constant 0 : index
      %14 = vector.load %arg5[%c0_12, %c0_13] : memref<16x64xbf16, #tpu.memory_space<vmem>>, vector<16x64xbf16>
      tpu.vector_store %arg5[%c0_12, %c0_13], %13 {strides = array<i32>} : memref<16x64xbf16, #tpu.memory_space<vmem>>, vector<16x64xbf16>,
    } else {
    }
    return
  }
  func.func @transform_0(%arg0: i32, %arg1: i32, %arg2: i32) -> (i32, i32) {
    %c0_i32 = arith.constant 0 : i32
    return %arg0, %arg2 : i32, i32
  }
  func.func @transform_1(%arg0: i32, %arg1: i32, %arg2: i32) -> (i32, i32) {
    %c0_i32 = arith.constant 0 : i32
    return %arg2, %arg1 : i32, i32
  }
  func.func @transform_2(%arg0: i32, %arg1: i32, %arg2: i32) -> (i32, i32) {
    %c0_i32 = arith.constant 0 : i32
    return %arg0, %arg1 : i32, i32
  }
}

</mosaic_0001>

<llo_original>
// kernel: tpu_custom_call.1
$region0: #{tpu_custom_call.1}
  #allocation0 [shape = 'u32[]', space=smem, size = 0x4, offset = 0x4, fixed_abs, tag = 'smem constant byte address 0x4 - core index']
  #allocation1 [shape = 'u32[144,128]{1,0:T(1,128)}', space=vmem, size = 0x12000, scoped, tag = 'internal scratch']
  #allocation2 [shape = 'f32[16,64]{1,0:T(8,128)}', space=vmem, size = 0x2000, scoped, tag = 'scratch operand']
  %s0 = inlined_call_operand.hbm [shape: bf16[16,32], index: 0, kind: input, shape index: {}]
  %s1 = inlined_call_operand.hbm [shape: bf16[32,64], index: 1, kind: input, shape index: {}]
  %s2 = inlined_call_operand.hbm [shape: bf16[16,64], index: 2, kind: output, shape index: {}]
  %s3 = sld [smem:[#allocation0]]
  $region34: #{tpu_custom_call.1} parent=0
    _
  %s5 = ssub.s32 1, %s3
  %s6 = scalar_select 0, %s5, %s3
  $region1: #{tpu_custom_call.1} parent=0
    #allocation3 [shape = 'u8[4096]{0}', space=vmem, size = 0x1000, scoped, tag = 'input window, operand 0, single buffered']
    #allocation4 [shape = 's32[1]{0}', space=sflag, size = 0x4, scoped, tag = 'scoped memory for tpu_custom_call.1']
    #allocation5 [shape = 's32[1]{0}', space=sflag, size = 0x4, scoped, tag = 'scoped memory for tpu_custom_call.1']
    #allocation6 [shape = 'u8[8192]{0}', space=vmem, size = 0x2000, scoped, tag = 'input window, operand 1, single buffered']
    #allocation7 [shape = 's32[1]{0}', space=sflag, size = 0x4, scoped, tag = 'scoped memory for tpu_custom_call.1']
    #allocation8 [shape = 'u8[4096]{0}', space=vmem, size = 0x1000, scoped, tag = 'output window, operand 0, single buffered']
    %7 = vsyncpa [#allocation4], 0
    %8 = vsyncpa [#allocation7], 0
    %9 = vsyncpa [#allocation5], 0
    // Predicated region
    $region2: #{tpu_custom_call.1} parent=1 // pred_check
      _
    $region3: #{tpu_custom_call.1} parent=1 // pred_check_branch
      %11 = sbr.rel (0) target = $region5
    $region4: #{tpu_custom_call.1} parent=1 // pred_region
      %s13 = ssub.s32 128, 128
      %14 = vsyncadd [#allocation4], %s13
      %s15 = sshll.u32 [#allocation3], 4
      %s16 = int_to_ptr.vmem [resolvable:$true] %s15
      %21 = dma.hbm_to_vmem [thread:$0]  %s0, 128, %s16, [#allocation4], 64, 64, 4
    $region5: #{tpu_custom_call.1} parent=1 // pred_fallthru
      _
    // Predicated region
    $region6: #{tpu_custom_call.1} parent=1 // pred_check
      _
    $region7: #{tpu_custom_call.1} parent=1 // pred_check_branch
      %23 = sbr.rel (0) target = $region9
    $region8: #{tpu_custom_call.1} parent=1 // pred_region
      %s25 = ssub.s32 256, 256
      %26 = vsyncadd [#allocation7], %s25
      %s27 = sshll.u32 [#allocation6], 4
      %s28 = int_to_ptr.vmem [resolvable:$true] %s27
      %33 = dma.hbm_to_vmem [thread:$0]  %s1, 256, %s28, [#allocation7], 64, 64, 4
    $region9: #{tpu_custom_call.1} parent=1 // pred_fallthru
      _
    // Predicated region
    $region10: #{tpu_custom_call.1} parent=1 // pred_check
      _
    $region11: #{tpu_custom_call.1} parent=1 // pred_check_branch
      %35 = sbr.rel (0) target = $region13
    $region12: #{tpu_custom_call.1} parent=1 // pred_region
      %36 = dma.done [#allocation4], 128
    $region13: #{tpu_custom_call.1} parent=1 // pred_fallthru
      _
    // Predicated region
    $region14: #{tpu_custom_call.1} parent=1 // pred_check
      _
    $region15: #{tpu_custom_call.1} parent=1 // pred_check_branch
      %38 = sbr.rel (0) target = $region17
    $region16: #{tpu_custom_call.1} parent=1 // pred_region
      %39 = dma.done [#allocation7], 256
    $region17: #{tpu_custom_call.1} parent=1 // pred_fallthru
      _
    %p41 = scmp.eq.s32.totalorder 0, 0
    // Predicated region
    $region18: #{tpu_custom_call.1} parent=1 // pred_check
      %p42 = pneg %p41
    $region19: #{tpu_custom_call.1} parent=1 // pred_check_branch
      %44 = sbr.rel (%p42) target = $region21
    $region20: #{tpu_custom_call.1} parent=1 // pred_region
      %vm45 = vcmask 523264
      %46 = vst.msk [vmem:[#allocation2] sm:$0xff] %vm45, 0.0
      %47 = vst.msk [vmem:[#allocation2 + $0x8] sm:$0xff] %vm45, 0.0
    $region21: #{tpu_custom_call.1} parent=1 // pred_fallthru
      _
    %v48 = vld [vmem:[#allocation2] sm:$0xff]
    %v49 = vld [vmem:[#allocation2 + $0x8] sm:$0xff]
    %v50 = vld [vmem:[#allocation3] sm:$0xf]
    %v51 = vld [vmem:[#allocation3 + $0x4] sm:$0xf]
    %v52 = vld [vmem:[#allocation6] sm:$0xf]
    %v53 = vld [vmem:[#allocation6 + $0x4] sm:$0xf]
    %v54 = vld [vmem:[#allocation6 + $0x8] sm:$0xf]
    %v55 = vld [vmem:[#allocation6 + $0xc] sm:$0xf]
    %v58 = vunpack.c.l.b16 %v50
    %v59 = vunpack.c.l.b16 %v51
    %v60 = vpack.c.b16 %v59, %v58
    %v65 = vunpack.c.l.b16 %v52
    %v66 = vunpack.c.l.b16 %v53
    %v67 = vunpack.c.l.b16 %v54
    %v68 = vunpack.c.l.b16 %v55
    %v69 = vpack.c.b16 %v66, %v65
    %v70 = vpack.c.b16 %v68, %v67
    %vm73 = vcmask 261120
    %v75 = vsel %vm73, %v60, 0
    %77 = vmatprep.subr.bf16.mxu0 0
    %78 = vmatpush1.bf16.msra.mxu0 %v69
    %79 = vmatprep.subr.bf16.mxu0 0
    %80 = vmatpush1.bf16.msra.mxu0 %v70
    %81 = vmatprep.subr.bf16.mxu0 0
    %82 = vmatpush1.bf16.msra.mxu0 0
    %83 = vmatprep.subr.bf16.mxu0 0
    %84 = vmatpush1.bf16.msra.mxu0 0
    %85 = vmatprep.subr.bf16.mxu0 0
    %86 = vmatpush1.bf16.msra.mxu0 0
    %87 = vmatprep.subr.bf16.mxu0 0
    %88 = vmatpush1.bf16.msra.mxu0 0
    %89 = vmatprep.subr.bf16.mxu0 0
    %90 = vmatpush1.bf16.msra.mxu0 0
    %91 = vmatprep.subr.bf16.mxu0 0
    %92 = vmatpush1.bf16.msra.mxu0 0
    %93 = vmatprep.subr.bf16.mxu0 0
    %94 = vmatpush1.bf16.msra.mxu0 0
    %95 = vmatprep.subr.bf16.mxu0 0
    %96 = vmatpush1.bf16.msra.mxu0 0
    %97 = vmatprep.subr.bf16.mxu0 0
    %98 = vmatpush1.bf16.msra.mxu0 0
    %99 = vmatprep.subr.bf16.mxu0 0
    %100 = vmatpush1.bf16.msra.mxu0 0
    %101 = vmatprep.subr.bf16.mxu0 0
    %102 = vmatpush1.bf16.msra.mxu0 0
    %103 = vmatprep.subr.bf16.mxu0 0
    %104 = vmatpush1.bf16.msra.mxu0 0
    %105 = vmatprep.subr.bf16.mxu0 0
    %106 = vmatpush1.bf16.msra.mxu0 0
    %107 = vmatprep.subr.bf16.mxu0 0
    %108 = vmatpush1.bf16.msra.mxu0 0
    %109 = vmatprep.mubr.bf16.mxu0 0
    %110 = vmatmul.mubr.bf16.gmra.mrb[0].mxu0 %v75
    %v111 = vpop.f32.mrb[0].mxu0
    %v112 = vadd.f32 0.0, %v111
    %v113 = vpop.f32.mrb[0].mxu0
    %v114 = vpop.f32.mrb[0].mxu0
    %v115 = vadd.f32 0.0, %v114
    %v116 = vpop.f32.mrb[0].mxu0
    %117 = vdwg.mxu0
    %v118 = vadd.f32 %v48, %v112
    %v119 = vadd.f32 %v49, %v115
    %vm120 = vcmask 523264
    %121 = vst.msk [vmem:[#allocation2] sm:$0xff] %vm120, %v118
    %122 = vst.msk [vmem:[#allocation2 + $0x8] sm:$0xff] %vm120, %v119
    // Predicated region
    $region22: #{tpu_custom_call.1} parent=1 // pred_check
      %p123 = pneg %p41
    $region23: #{tpu_custom_call.1} parent=1 // pred_check_branch
      %125 = sbr.rel (%p123) target = $region25
    $region24: #{tpu_custom_call.1} parent=1 // pred_region
      %v126 = vld [vmem:[#allocation2] sm:$0xff]
      %v127 = vld [vmem:[#allocation2 + $0x8] sm:$0xff]
      %v128 = vpack.c.bf16 %v127, %v126
      %v130 = vunpack.c.l.b16 %v128
      %v131 = vunpack.c.h.b16 %v128
      %v132 = vpack.c.b16 %v130, %v130
      %v133 = vpack.c.b16 %v131, %v131
      %vm136 = vcmask 519168
      %137 = vst.msk [vmem:[#allocation8] sm:$0xf] %vm136, %v132
      %138 = vst.msk [vmem:[#allocation8 + $0x4] sm:$0xf] %vm136, %v133
    $region25: #{tpu_custom_call.1} parent=1 // pred_fallthru
      _
    // Predicated region
    $region26: #{tpu_custom_call.1} parent=1 // pred_check
      _
    $region27: #{tpu_custom_call.1} parent=1 // pred_check_branch
      %140 = sbr.rel (0) target = $region29
    $region28: #{tpu_custom_call.1} parent=1 // pred_region
      %s142 = ssub.s32 128, 128
      %143 = vsyncadd [#allocation5], %s142
      %s144 = sshll.u32 [#allocation8], 4
      %s145 = int_to_ptr.vmem [resolvable:$true] %s144
      %150 = dma.vmem_to_hbm [thread:$0]  %s145, 128, %s2, [#allocation5], 64, 64, 4
    $region29: #{tpu_custom_call.1} parent=1 // pred_fallthru
      _
    // Predicated region
    $region30: #{tpu_custom_call.1} parent=1 // pred_check
      _
    $region31: #{tpu_custom_call.1} parent=1 // pred_check_branch
      %152 = sbr.rel (0) target = $region33
    $region32: #{tpu_custom_call.1} parent=1 // pred_region
      %153 = dma.done [#allocation5], 128
    $region33: #{tpu_custom_call.1} parent=1 // pred_fallthru
      _
    %154 = vsyncpa [#allocation4], 1
    %155 = vsyncpa [#allocation7], 1
    %156 = vsyncpa [#allocation5], 1

</llo_original>
